<compile_context>
chip_gen: v5e
topology: v5e:2x2
jax: 0.10.0
libtpu: 0.0.40
codegen_flags: <defaults>
</compile_context>

<pallas_src>
import jax
import jax.numpy as jnp
import numpy as np
from jax.experimental import pallas as pl
from jax.experimental.pallas import tpu as pltpu


def mlp_kernel(x_ref, w1_ref, w2_ref, o_ref):
    # First matmul on the MXU, f32 operands, f32 accumulation.
    hidden = jnp.dot(x_ref[...], w1_ref[...],
                     preferred_element_type=jnp.float32)      # (Bp, H) f32
    hidden = jnp.maximum(hidden, 0.0)                          # relu on VPU
    # Second matmul, lane-dense (128-wide) f32 output -> unmasked vst.
    o_ref[...] = jnp.dot(hidden, w2_ref[...],
                         preferred_element_type=jnp.float32)   # (Bp, 128) f32


def simple_nn_forward(x_nchw, w1, w2):
    """Pallas implementation of SimpleNN.forward.

    x_nchw: (B, C, H, W) float32
    w1:     (C*H*W, hidden_dim) float32
    w2:     (hidden_dim, 10) float32
    returns (B, 10) float32
    """
    B = x_nchw.shape[0]
    x2d = x_nchw.reshape(B, -1)                 # == x.view(x.size(0), -1)
    D = x2d.shape[1]
    H = w1.shape[1]
    O = w2.shape[1]

    # Round batch up to the sublane quantum (8) and output cols up to the lane
    # quantum (128) so every store inside the kernel is unmasked.
    B_pad = max(8, pl.cdiv(B, 8) * 8)
    O_pad = max(128, pl.cdiv(O, 128) * 128)

    x_pad = jnp.zeros((B_pad, D), jnp.float32).at[:B].set(x2d.astype(jnp.float32))
    w2_pad = jnp.zeros((H, O_pad), jnp.float32).at[:, :O].set(w2.astype(jnp.float32))
    w1_f32 = w1.astype(jnp.float32)

    bytes_accessed = (x_pad.size * 4 + w1_f32.size * 4
                      + w2_pad.size * 4 + B_pad * O_pad * 4)
    flops = 2 * B_pad * D * H + 2 * B_pad * H * O_pad

    out_pad = pl.pallas_call(
        mlp_kernel,
        out_shape=jax.ShapeDtypeStruct((B_pad, O_pad), jnp.float32),
        in_specs=[
            pl.BlockSpec(memory_space=pltpu.MemorySpace.VMEM),
            pl.BlockSpec(memory_space=pltpu.MemorySpace.VMEM),
            pl.BlockSpec(memory_space=pltpu.MemorySpace.VMEM),
        ],
        out_specs=pl.BlockSpec(memory_space=pltpu.MemorySpace.VMEM),
        cost_estimate=pl.CostEstimate(
            flops=flops, transcendentals=0, bytes_accessed=bytes_accessed),
    )(x_pad, w1_f32, w2_pad)

    return out_pad[:B, :O]


if __name__ == "__main__":
    # Small shapes consistent with the module:
    #   x: [2, 4, 16, 16]  ->  input_dim = 4*16*16 = 1024, hidden_dim = 32
    B, C, Hs, Ws = 2, 4, 16, 16
    input_dim = C * Hs * Ws
    hidden_dim = 32

    key = jax.random.PRNGKey(0)
    kx, kw1, kw2 = jax.random.split(key, 3)

    x = jax.random.normal(kx, (B, C, Hs, Ws), dtype=jnp.float32)
    # nn.init.normal_(zeros) -> standard normal, deterministic via PRNGKey
    w1 = jax.random.normal(kw1, (input_dim, hidden_dim), dtype=jnp.float32)
    w2 = jax.random.normal(kw2, (hidden_dim, 10), dtype=jnp.float32)

    out = simple_nn_forward(x, w1, w2)
    out = jax.block_until_ready(out)
    assert out.shape == (B, 10)

    # Ground-truth reference in numpy float64 (same semantics as the PyTorch
    # module's f32 forward).  Tolerance covers only MXU f32 rounding.
    x2d_np = np.asarray(x, dtype=np.float64).reshape(B, -1)
    w1_np = np.asarray(w1, dtype=np.float64)
    w2_np = np.asarray(w2, dtype=np.float64)
    ref = np.maximum(x2d_np @ w1_np, 0.0) @ w2_np

    assert np.allclose(np.asarray(out, dtype=np.float64), ref,
                       rtol=1e-2, atol=1e-1), (
        np.max(np.abs(np.asarray(out, dtype=np.float64) - ref)))

    print("KERNEL_OK")
</pallas_src>

<mosaic_0001>
module attributes {stable_mosaic.version = 11 : i64} {
  func.func @mlp_kernel(%arg0: memref<8x1024xf32, #tpu.memory_space<vmem>>, %arg1: memref<1024x32xf32, #tpu.memory_space<vmem>>, %arg2: memref<32x128xf32, #tpu.memory_space<vmem>>, %arg3: memref<8x128xf32, #tpu.memory_space<vmem>>) attributes {dimension_semantics = [], scalar_prefetch = 0 : i64, scratch_operands = 0 : i64, tpu.core_type = #tpu.core_type<tc>} {
    %c0 = arith.constant 0 : index
    %c0_0 = arith.constant 0 : index
    %0 = vector.load %arg0[%c0, %c0_0] : memref<8x1024xf32, #tpu.memory_space<vmem>>, vector<8x1024xf32>
    %c0_1 = arith.constant 0 : index
    %c0_2 = arith.constant 0 : index
    %1 = vector.load %arg1[%c0_1, %c0_2] : memref<1024x32xf32, #tpu.memory_space<vmem>>, vector<1024x32xf32>
    %cst = arith.constant dense<0.000000e+00> : vector<8x32xf32>
    %2 = tpu.matmul %0, %1, %cst {dimension_numbers = #tpu.dot_dimension_numbers<[1], [0], [0], [1], [0, 0, 1, 1], [], []>} : vector<8x1024xf32>, vector<1024x32xf32>, vector<8x32xf32> -> vector<8x32xf32>
    %cst_3 = arith.constant 0.000000e+00 : f32
    %3 = vector.broadcast %cst_3 : f32 to vector<8x32xf32>
    %4 = arith.maximumf %2, %3 : vector<8x32xf32>
    %c0_4 = arith.constant 0 : index
    %c0_5 = arith.constant 0 : index
    %5 = vector.load %arg2[%c0_4, %c0_5] : memref<32x128xf32, #tpu.memory_space<vmem>>, vector<32x128xf32>
    %cst_6 = arith.constant dense<0.000000e+00> : vector<8x128xf32>
    %6 = tpu.matmul %4, %5, %cst_6 {dimension_numbers = #tpu.dot_dimension_numbers<[1], [0], [0], [1], [0, 0, 1, 1], [], []>} : vector<8x32xf32>, vector<32x128xf32>, vector<8x128xf32> -> vector<8x128xf32>
    %c0_7 = arith.constant 0 : index
    %c0_8 = arith.constant 0 : index
    %7 = vector.load %arg3[%c0_7, %c0_8] : memref<8x128xf32, #tpu.memory_space<vmem>>, vector<8x128xf32>
    tpu.vector_store %arg3[%c0_7, %c0_8], %6 {strides = array<i32>} : memref<8x128xf32, #tpu.memory_space<vmem>>, vector<8x128xf32>,
    return
  }
}

</mosaic_0001>

<llo_original>
// kernel: tpu_custom_call.1
$region0: #{tpu_custom_call.1}
  #allocation0 [shape = 'u32[]', space=smem, size = 0x4, offset = 0x4, fixed_abs, tag = 'smem constant byte address 0x4 - core index']
  #allocation1 [shape = 'u32[72,128]{1,0:T(1,128)}', space=vmem, size = 0x9000, scoped, tag = 'internal scratch']
  %s0 = inlined_call_operand.vmem [shape: f32[8,1024], index: 0, kind: input, shape index: {}]
  %s1 = inlined_call_operand.vmem [shape: f32[1024,32], index: 1, kind: input, shape index: {}]
  %s2 = inlined_call_operand.vmem [shape: f32[32,128], index: 2, kind: input, shape index: {}]
  %s3 = inlined_call_operand.hbm [shape: f32[8,128], index: 3, kind: output, shape index: {}]
  %s4 = sld [smem:[#allocation0]]
  $region22: #{tpu_custom_call.1} parent=0
    _
  %s6 = ssub.s32 1, %s4
  %s7 = scalar_select 0, %s6, %s4
  $region1: #{tpu_custom_call.1} parent=0
    #allocation2 [shape = 'u8[4096]{0}', space=vmem, size = 0x1000, scoped, tag = 'output window, operand 0, single buffered']
    #allocation3 [shape = 's32[1]{0}', space=sflag, size = 0x4, scoped, tag = 'scoped memory for tpu_custom_call.1']
    %8 = vsyncpa [#allocation3], 0
    // Predicated region
    $region2: #{tpu_custom_call.1} parent=1 // pred_check
      _
    $region3: #{tpu_custom_call.1} parent=1 // pred_check_branch
      %10 = sbr.rel (0) target = $region5
    $region4: #{tpu_custom_call.1} parent=1 // pred_region
      _
    $region5: #{tpu_custom_call.1} parent=1 // pred_fallthru
      _
    // Predicated region
    $region6: #{tpu_custom_call.1} parent=1 // pred_check
      _
    $region7: #{tpu_custom_call.1} parent=1 // pred_check_branch
      %12 = sbr.rel (0) target = $region9
    $region8: #{tpu_custom_call.1} parent=1 // pred_region
      _
    $region9: #{tpu_custom_call.1} parent=1 // pred_fallthru
      _
    // Predicated region
    $region10: #{tpu_custom_call.1} parent=1 // pred_check
      _
    $region11: #{tpu_custom_call.1} parent=1 // pred_check_branch
      %14 = sbr.rel (0) target = $region13
    $region12: #{tpu_custom_call.1} parent=1 // pred_region
      _
    $region13: #{tpu_custom_call.1} parent=1 // pred_fallthru
      _
    %v15 = vld [vmem:[%s0] sm:$0xff]
    %v16 = vld [vmem:[%s0 + $0x8] sm:$0xff]
    %v17 = vld [vmem:[%s0 + $0x10] sm:$0xff]
    %v18 = vld [vmem:[%s0 + $0x18] sm:$0xff]
    %v19 = vld [vmem:[%s0 + $0x20] sm:$0xff]
    %v20 = vld [vmem:[%s0 + $0x28] sm:$0xff]
    %v21 = vld [vmem:[%s0 + $0x30] sm:$0xff]
    %v22 = vld [vmem:[%s0 + $0x38] sm:$0xff]
    %v23 = vld [vmem:[%s1] sm:$0xff]
    %v24 = vld [vmem:[%s1 + $0x8] sm:$0xff]
    %v25 = vld [vmem:[%s1 + $0x10] sm:$0xff]
    %v26 = vld [vmem:[%s1 + $0x18] sm:$0xff]
    %v27 = vld [vmem:[%s1 + $0x20] sm:$0xff]
    %v28 = vld [vmem:[%s1 + $0x28] sm:$0xff]
    %v29 = vld [vmem:[%s1 + $0x30] sm:$0xff]
    %v30 = vld [vmem:[%s1 + $0x38] sm:$0xff]
    %v31 = vld [vmem:[%s1 + $0x40] sm:$0xff]
    %v32 = vld [vmem:[%s1 + $0x48] sm:$0xff]
    %v33 = vld [vmem:[%s1 + $0x50] sm:$0xff]
    %v34 = vld [vmem:[%s1 + $0x58] sm:$0xff]
    %v35 = vld [vmem:[%s1 + $0x60] sm:$0xff]
    %v36 = vld [vmem:[%s1 + $0x68] sm:$0xff]
    %v37 = vld [vmem:[%s1 + $0x70] sm:$0xff]
    %v38 = vld [vmem:[%s1 + $0x78] sm:$0xff]
    %v39 = vld [vmem:[%s1 + $0x80] sm:$0xff]
    %v40 = vld [vmem:[%s1 + $0x88] sm:$0xff]
    %v41 = vld [vmem:[%s1 + $0x90] sm:$0xff]
    %v42 = vld [vmem:[%s1 + $0x98] sm:$0xff]
    %v43 = vld [vmem:[%s1 + $0xa0] sm:$0xff]
    %v44 = vld [vmem:[%s1 + $0xa8] sm:$0xff]
    %v45 = vld [vmem:[%s1 + $0xb0] sm:$0xff]
    %v46 = vld [vmem:[%s1 + $0xb8] sm:$0xff]
    %v47 = vld [vmem:[%s1 + $0xc0] sm:$0xff]
    %v48 = vld [vmem:[%s1 + $0xc8] sm:$0xff]
    %v49 = vld [vmem:[%s1 + $0xd0] sm:$0xff]
    %v50 = vld [vmem:[%s1 + $0xd8] sm:$0xff]
    %v51 = vld [vmem:[%s1 + $0xe0] sm:$0xff]
    %v52 = vld [vmem:[%s1 + $0xe8] sm:$0xff]
    %v53 = vld [vmem:[%s1 + $0xf0] sm:$0xff]
    %v54 = vld [vmem:[%s1 + $0xf8] sm:$0xff]
    %v55 = vld [vmem:[%s1 + $0x100] sm:$0xff]
    %v56 = vld [vmem:[%s1 + $0x108] sm:$0xff]
    %v57 = vld [vmem:[%s1 + $0x110] sm:$0xff]
    %v58 = vld [vmem:[%s1 + $0x118] sm:$0xff]
    %v59 = vld [vmem:[%s1 + $0x120] sm:$0xff]
    %v60 = vld [vmem:[%s1 + $0x128] sm:$0xff]
    %v61 = vld [vmem:[%s1 + $0x130] sm:$0xff]
    %v62 = vld [vmem:[%s1 + $0x138] sm:$0xff]
    %v63 = vld [vmem:[%s1 + $0x140] sm:$0xff]
    %v64 = vld [vmem:[%s1 + $0x148] sm:$0xff]
    %v65 = vld [vmem:[%s1 + $0x150] sm:$0xff]
    %v66 = vld [vmem:[%s1 + $0x158] sm:$0xff]
    %v67 = vld [vmem:[%s1 + $0x160] sm:$0xff]
    %v68 = vld [vmem:[%s1 + $0x168] sm:$0xff]
    %v69 = vld [vmem:[%s1 + $0x170] sm:$0xff]
    %v70 = vld [vmem:[%s1 + $0x178] sm:$0xff]
    %v71 = vld [vmem:[%s1 + $0x180] sm:$0xff]
    %v72 = vld [vmem:[%s1 + $0x188] sm:$0xff]
    %v73 = vld [vmem:[%s1 + $0x190] sm:$0xff]
    %v74 = vld [vmem:[%s1 + $0x198] sm:$0xff]
    %v75 = vld [vmem:[%s1 + $0x1a0] sm:$0xff]
    %v76 = vld [vmem:[%s1 + $0x1a8] sm:$0xff]
    %v77 = vld [vmem:[%s1 + $0x1b0] sm:$0xff]
    %v78 = vld [vmem:[%s1 + $0x1b8] sm:$0xff]
    %v79 = vld [vmem:[%s1 + $0x1c0] sm:$0xff]
    %v80 = vld [vmem:[%s1 + $0x1c8] sm:$0xff]
    %v81 = vld [vmem:[%s1 + $0x1d0] sm:$0xff]
    %v82 = vld [vmem:[%s1 + $0x1d8] sm:$0xff]
    %v83 = vld [vmem:[%s1 + $0x1e0] sm:$0xff]
    %v84 = vld [vmem:[%s1 + $0x1e8] sm:$0xff]
    %v85 = vld [vmem:[%s1 + $0x1f0] sm:$0xff]
    %v86 = vld [vmem:[%s1 + $0x1f8] sm:$0xff]
    %v87 = vld [vmem:[%s1 + $0x200] sm:$0xff]
    %v88 = vld [vmem:[%s1 + $0x208] sm:$0xff]
    %v89 = vld [vmem:[%s1 + $0x210] sm:$0xff]
    %v90 = vld [vmem:[%s1 + $0x218] sm:$0xff]
    %v91 = vld [vmem:[%s1 + $0x220] sm:$0xff]
    %v92 = vld [vmem:[%s1 + $0x228] sm:$0xff]
    %v93 = vld [vmem:[%s1 + $0x230] sm:$0xff]
    %v94 = vld [vmem:[%s1 + $0x238] sm:$0xff]
    %v95 = vld [vmem:[%s1 + $0x240] sm:$0xff]
    %v96 = vld [vmem:[%s1 + $0x248] sm:$0xff]
    %v97 = vld [vmem:[%s1 + $0x250] sm:$0xff]
    %v98 = vld [vmem:[%s1 + $0x258] sm:$0xff]
    %v99 = vld [vmem:[%s1 + $0x260] sm:$0xff]
    %v100 = vld [vmem:[%s1 + $0x268] sm:$0xff]
    %v101 = vld [vmem:[%s1 + $0x270] sm:$0xff]
    %v102 = vld [vmem:[%s1 + $0x278] sm:$0xff]
    %v103 = vld [vmem:[%s1 + $0x280] sm:$0xff]
    %v104 = vld [vmem:[%s1 + $0x288] sm:$0xff]
    %v105 = vld [vmem:[%s1 + $0x290] sm:$0xff]
    %v106 = vld [vmem:[%s1 + $0x298] sm:$0xff]
    %v107 = vld [vmem:[%s1 + $0x2a0] sm:$0xff]
    %v108 = vld [vmem:[%s1 + $0x2a8] sm:$0xff]
    %v109 = vld [vmem:[%s1 + $0x2b0] sm:$0xff]
    %v110 = vld [vmem:[%s1 + $0x2b8] sm:$0xff]
    %v111 = vld [vmem:[%s1 + $0x2c0] sm:$0xff]
    %v112 = vld [vmem:[%s1 + $0x2c8] sm:$0xff]
    %v113 = vld [vmem:[%s1 + $0x2d0] sm:$0xff]
    %v114 = vld [vmem:[%s1 + $0x2d8] sm:$0xff]
    %v115 = vld [vmem:[%s1 + $0x2e0] sm:$0xff]
    %v116 = vld [vmem:[%s1 + $0x2e8] sm:$0xff]
    %v117 = vld [vmem:[%s1 + $0x2f0] sm:$0xff]
    %v118 = vld [vmem:[%s1 + $0x2f8] sm:$0xff]
    %v119 = vld [vmem:[%s1 + $0x300] sm:$0xff]
    %v120 = vld [vmem:[%s1 + $0x308] sm:$0xff]
    %v121 = vld [vmem:[%s1 + $0x310] sm:$0xff]
    %v122 = vld [vmem:[%s1 + $0x318] sm:$0xff]
    %v123 = vld [vmem:[%s1 + $0x320] sm:$0xff]
    %v124 = vld [vmem:[%s1 + $0x328] sm:$0xff]
    %v125 = vld [vmem:[%s1 + $0x330] sm:$0xff]
    %v126 = vld [vmem:[%s1 + $0x338] sm:$0xff]
    %v127 = vld [vmem:[%s1 + $0x340] sm:$0xff]
    %v128 = vld [vmem:[%s1 + $0x348] sm:$0xff]
    %v129 = vld [vmem:[%s1 + $0x350] sm:$0xff]
    %v130 = vld [vmem:[%s1 + $0x358] sm:$0xff]
    %v131 = vld [vmem:[%s1 + $0x360] sm:$0xff]
    %v132 = vld [vmem:[%s1 + $0x368] sm:$0xff]
    %v133 = vld [vmem:[%s1 + $0x370] sm:$0xff]
    %v134 = vld [vmem:[%s1 + $0x378] sm:$0xff]
    %v135 = vld [vmem:[%s1 + $0x380] sm:$0xff]
    %v136 = vld [vmem:[%s1 + $0x388] sm:$0xff]
    %v137 = vld [vmem:[%s1 + $0x390] sm:$0xff]
    %v138 = vld [vmem:[%s1 + $0x398] sm:$0xff]
    %v139 = vld [vmem:[%s1 + $0x3a0] sm:$0xff]
    %v140 = vld [vmem:[%s1 + $0x3a8] sm:$0xff]
    %v141 = vld [vmem:[%s1 + $0x3b0] sm:$0xff]
    %v142 = vld [vmem:[%s1 + $0x3b8] sm:$0xff]
    %v143 = vld [vmem:[%s1 + $0x3c0] sm:$0xff]
    %v144 = vld [vmem:[%s1 + $0x3c8] sm:$0xff]
    %v145 = vld [vmem:[%s1 + $0x3d0] sm:$0xff]
    %v146 = vld [vmem:[%s1 + $0x3d8] sm:$0xff]
    %v147 = vld [vmem:[%s1 + $0x3e0] sm:$0xff]
    %v148 = vld [vmem:[%s1 + $0x3e8] sm:$0xff]
    %v149 = vld [vmem:[%s1 + $0x3f0] sm:$0xff]
    %v150 = vld [vmem:[%s1 + $0x3f8] sm:$0xff]
    %151 = vmatpush.msra.mxu0 %v38
    %152 = vmatpush.msra.mxu0 %v37
    %153 = vmatpush.msra.mxu0 %v36
    %154 = vmatpush.msra.mxu0 %v35
    %155 = vmatpush.msra.mxu0 %v34
    %156 = vmatpush.msra.mxu0 %v33
    %157 = vmatpush.msra.mxu0 %v32
    %158 = vmatpush.msra.mxu0 %v31
    %159 = vmatpush.msra.mxu0 %v30
    %160 = vmatpush.msra.mxu0 %v29
    %161 = vmatpush.msra.mxu0 %v28
    %162 = vmatpush.msra.mxu0 %v27
    %163 = vmatpush.msra.mxu0 %v26
    %164 = vmatpush.msra.mxu0 %v25
    %165 = vmatpush.msra.mxu0 %v24
    %166 = vmatpush.msra.mxu0 %v23
    %167 = vmatmul.f32.gmra.mxu0 %v15
    %v168 = vpop.f32.mrf.mxu0
    %v169 = vadd.f32 0.0, %v168
    %170 = vdwg.mxu0
    %171 = vmatpush.msra.mxu0 %v54
    %172 = vmatpush.msra.mxu0 %v53
    %173 = vmatpush.msra.mxu0 %v52
    %174 = vmatpush.msra.mxu0 %v51
    %175 = vmatpush.msra.mxu0 %v50
    %176 = vmatpush.msra.mxu0 %v49
    %177 = vmatpush.msra.mxu0 %v48
    %178 = vmatpush.msra.mxu0 %v47
    %179 = vmatpush.msra.mxu0 %v46
    %180 = vmatpush.msra.mxu0 %v45
    %181 = vmatpush.msra.mxu0 %v44
    %182 = vmatpush.msra.mxu0 %v43
    %183 = vmatpush.msra.mxu0 %v42
    %184 = vmatpush.msra.mxu0 %v41
    %185 = vmatpush.msra.mxu0 %v40
    %186 = vmatpush.msra.mxu0 %v39
    %187 = vmatmul.f32.gmra.mxu0 %v16
    %v188 = vpop.f32.mrf.mxu0
    %v189 = vadd.f32 %v169, %v188
    %190 = vdwg.mxu0
    %191 = vmatpush.msra.mxu0 %v70
    %192 = vmatpush.msra.mxu0 %v69
    %193 = vmatpush.msra.mxu0 %v68
    %194 = vmatpush.msra.mxu0 %v67
    %195 = vmatpush.msra.mxu0 %v66
    %196 = vmatpush.msra.mxu0 %v65
    %197 = vmatpush.msra.mxu0 %v64
    %198 = vmatpush.msra.mxu0 %v63
    %199 = vmatpush.msra.mxu0 %v62
    %200 = vmatpush.msra.mxu0 %v61
    %201 = vmatpush.msra.mxu0 %v60
    %202 = vmatpush.msra.mxu0 %v59
    %203 = vmatpush.msra.mxu0 %v58
    %204 = vmatpush.msra.mxu0 %v57
    %205 = vmatpush.msra.mxu0 %v56
    %206 = vmatpush.msra.mxu0 %v55
    %207 = vmatmul.f32.gmra.mxu0 %v17
    %v208 = vpop.f32.mrf.mxu0
    %v209 = vadd.f32 %v189, %v208
    %210 = vdwg.mxu0
    %211 = vmatpush.msra.mxu0 %v86
    %212 = vmatpush.msra.mxu0 %v85
    %213 = vmatpush.msra.mxu0 %v84
    %214 = vmatpush.msra.mxu0 %v83
    %215 = vmatpush.msra.mxu0 %v82
    %216 = vmatpush.msra.mxu0 %v81
    %217 = vmatpush.msra.mxu0 %v80
    %218 = vmatpush.msra.mxu0 %v79
    %219 = vmatpush.msra.mxu0 %v78
    %220 = vmatpush.msra.mxu0 %v77
    %221 = vmatpush.msra.mxu0 %v76
    %222 = vmatpush.msra.mxu0 %v75
    %223 = vmatpush.msra.mxu0 %v74
    %224 = vmatpush.msra.mxu0 %v73
    %225 = vmatpush.msra.mxu0 %v72
    %226 = vmatpush.msra.mxu0 %v71
    %227 = vmatmul.f32.gmra.mxu0 %v18
    %v228 = vpop.f32.mrf.mxu0
    %v229 = vadd.f32 %v209, %v228
    %230 = vdwg.mxu0
    %231 = vmatpush.msra.mxu0 %v102
    %232 = vmatpush.msra.mxu0 %v101
    %233 = vmatpush.msra.mxu0 %v100
    %234 = vmatpush.msra.mxu0 %v99
    %235 = vmatpush.msra.mxu0 %v98
    %236 = vmatpush.msra.mxu0 %v97
    %237 = vmatpush.msra.mxu0 %v96
    %238 = vmatpush.msra.mxu0 %v95
    %239 = vmatpush.msra.mxu0 %v94
    %240 = vmatpush.msra.mxu0 %v93
    %241 = vmatpush.msra.mxu0 %v92
    %242 = vmatpush.msra.mxu0 %v91
    %243 = vmatpush.msra.mxu0 %v90
    %244 = vmatpush.msra.mxu0 %v89
    %245 = vmatpush.msra.mxu0 %v88
    %246 = vmatpush.msra.mxu0 %v87
    %247 = vmatmul.f32.gmra.mxu0 %v19
    %v248 = vpop.f32.mrf.mxu0
    %v249 = vadd.f32 %v229, %v248
    %250 = vdwg.mxu0
    %251 = vmatpush.msra.mxu0 %v118
    %252 = vmatpush.msra.mxu0 %v117
    %253 = vmatpush.msra.mxu0 %v116
    %254 = vmatpush.msra.mxu0 %v115
    %255 = vmatpush.msra.mxu0 %v114
    %256 = vmatpush.msra.mxu0 %v113
    %257 = vmatpush.msra.mxu0 %v112
    %258 = vmatpush.msra.mxu0 %v111
    %259 = vmatpush.msra.mxu0 %v110
    %260 = vmatpush.msra.mxu0 %v109
    %261 = vmatpush.msra.mxu0 %v108
    %262 = vmatpush.msra.mxu0 %v107
    %263 = vmatpush.msra.mxu0 %v106
    %264 = vmatpush.msra.mxu0 %v105
    %265 = vmatpush.msra.mxu0 %v104
    %266 = vmatpush.msra.mxu0 %v103
    %267 = vmatmul.f32.gmra.mxu0 %v20
    %v268 = vpop.f32.mrf.mxu0
    %v269 = vadd.f32 %v249, %v268
    %270 = vdwg.mxu0
    %271 = vmatpush.msra.mxu0 %v134
    %272 = vmatpush.msra.mxu0 %v133
    %273 = vmatpush.msra.mxu0 %v132
    %274 = vmatpush.msra.mxu0 %v131
    %275 = vmatpush.msra.mxu0 %v130
    %276 = vmatpush.msra.mxu0 %v129
    %277 = vmatpush.msra.mxu0 %v128
    %278 = vmatpush.msra.mxu0 %v127
    %279 = vmatpush.msra.mxu0 %v126
    %280 = vmatpush.msra.mxu0 %v125
    %281 = vmatpush.msra.mxu0 %v124
    %282 = vmatpush.msra.mxu0 %v123
    %283 = vmatpush.msra.mxu0 %v122
    %284 = vmatpush.msra.mxu0 %v121
    %285 = vmatpush.msra.mxu0 %v120
    %286 = vmatpush.msra.mxu0 %v119
    %287 = vmatmul.f32.gmra.mxu0 %v21
    %v288 = vpop.f32.mrf.mxu0
    %v289 = vadd.f32 %v269, %v288
    %290 = vdwg.mxu0
    %291 = vmatpush.msra.mxu0 %v150
    %292 = vmatpush.msra.mxu0 %v149
    %293 = vmatpush.msra.mxu0 %v148
    %294 = vmatpush.msra.mxu0 %v147
    %295 = vmatpush.msra.mxu0 %v146
    %296 = vmatpush.msra.mxu0 %v145
    %297 = vmatpush.msra.mxu0 %v144
    %298 = vmatpush.msra.mxu0 %v143
    %299 = vmatpush.msra.mxu0 %v142
    %300 = vmatpush.msra.mxu0 %v141
    %301 = vmatpush.msra.mxu0 %v140
    %302 = vmatpush.msra.mxu0 %v139
    %303 = vmatpush.msra.mxu0 %v138
    %304 = vmatpush.msra.mxu0 %v137
    %305 = vmatpush.msra.mxu0 %v136
    %306 = vmatpush.msra.mxu0 %v135
    %307 = vmatmul.f32.gmra.mxu0 %v22
    %v308 = vpop.f32.mrf.mxu0
    %v309 = vadd.f32 %v289, %v308
    %310 = vdwg.mxu0
    %v311 = vmax.f32 %v309, 0.0
    %v312 = vld [vmem:[%s2] sm:$0xff]
    %v313 = vld [vmem:[%s2 + $0x8] sm:$0xff]
    %v314 = vld [vmem:[%s2 + $0x10] sm:$0xff]
    %v315 = vld [vmem:[%s2 + $0x18] sm:$0xff]
    %vm316 = vcmask 261120
    %v318 = vsel %vm316, %v311, 0
    %320 = vmatpush.msra.mxu0 0.0
    %321 = vmatpush.msra.mxu0 0.0
    %322 = vmatpush.msra.mxu0 0.0
    %323 = vmatpush.msra.mxu0 0.0
    %324 = vmatpush.msra.mxu0 0.0
    %325 = vmatpush.msra.mxu0 0.0
    %326 = vmatpush.msra.mxu0 0.0
    %327 = vmatpush.msra.mxu0 0.0
    %328 = vmatpush.msra.mxu0 0.0
    %329 = vmatpush.msra.mxu0 0.0
    %330 = vmatpush.msra.mxu0 0.0
    %331 = vmatpush.msra.mxu0 0.0
    %332 = vmatpush.msra.mxu0 %v315
    %333 = vmatpush.msra.mxu0 %v314
    %334 = vmatpush.msra.mxu0 %v313
    %335 = vmatpush.msra.mxu0 %v312
    %336 = vmatmul.f32.gmra.mxu0 %v318
    %v337 = vpop.f32.mrf.mxu0
    %v338 = vadd.f32 0.0, %v337
    %339 = vdwg.mxu0
    %340 = vst [vmem:[#allocation2] sm:$0xff] %v338
    // Predicated region
    $region14: #{tpu_custom_call.1} parent=1 // pred_check
      _
    $region15: #{tpu_custom_call.1} parent=1 // pred_check_branch
      %342 = sbr.rel (0) target = $region17
    $region16: #{tpu_custom_call.1} parent=1 // pred_region
      %344 = vsyncadd [#allocation3], 0
      %s346 = sshll.u32 [#allocation2], 4
      %s347 = int_to_ptr.vmem [resolvable:$true] %s346
      %s348 = sshll.u32 %s3, 4
      %s349 = int_to_ptr.hbm [resolvable:$true] %s348
      %351 = dma.vmem_to_hbm [thread:$0]  %s347, 128, %s349, [#allocation3]
    $region17: #{tpu_custom_call.1} parent=1 // pred_fallthru
      _
    // Predicated region
    $region18: #{tpu_custom_call.1} parent=1 // pred_check
      _
    $region19: #{tpu_custom_call.1} parent=1 // pred_check_branch
      %353 = sbr.rel (0) target = $region21
    $region20: #{tpu_custom_call.1} parent=1 // pred_region
      %355 = dma.done [#allocation3], 128
    $region21: #{tpu_custom_call.1} parent=1 // pred_fallthru
      _
    %356 = vsyncpa [#allocation3], 1

</llo_original>
